<compile_context>
chip_gen: v5e
topology: v5e:2x2
jax: 0.10.0
libtpu: 0.0.40
codegen_flags: <defaults>
</compile_context>

<pallas_src>
import functools
import math

import jax
import jax.numpy as jnp
from jax.experimental import pallas as pl
from jax.experimental.pallas import tpu as pltpu


def _sr_polling_kernel(x_ref, mu_ref, std_ref, *, inv_d, inv_dm1):
    # x_ref: (TR, D) tile in VMEM; mu_ref / std_ref: (1, TR) lane-dense tiles.
    x = x_ref[...].astype(jnp.float32)
    # Single pass: s1 = sum(x), s2 = sum(x*x) over the lane (feature) axis.
    s1 = jnp.sum(x, axis=-1)                    # (TR,)
    s2 = jnp.sum(x * x, axis=-1)                # (TR,)
    mu = s1 * inv_d
    var = (s2 - s1 * mu) * inv_dm1              # unbiased (ddof=1), torch.std default
    var = jnp.maximum(var, 0.0)                 # guard cancellation-induced negatives
    std = jnp.sqrt(var)
    mu_ref[...] = mu[None, :].astype(mu_ref.dtype)
    std_ref[...] = std[None, :].astype(std_ref.dtype)


def sr_polling(x, *, block_rows=None, target_block_bytes=4 * 1024 * 1024):
    """Pallas equivalent of SRPolling.forward: cat([mean(x,-1), std(x,-1)], -1)."""
    assert x.ndim >= 2, "SRPolling expects at least a 2-D input"
    *lead, D = x.shape
    R = math.prod(lead)
    x2d = x.reshape(R, D)

    # Rows per grid step: multiple of 8, sized for a ~4 MiB input tile
    # (x2 for double-buffering stays well inside v7x's scoped VMEM).
    itemsize = jnp.dtype(x.dtype).itemsize
    if block_rows is None:
        tr = target_block_bytes // max(D * itemsize, 1)
        tr = int(min(max(tr, 8), 2048))
    else:
        tr = int(block_rows)
    tr = max(8, (tr // 8) * 8)
    r_ceil8 = ((R + 7) // 8) * 8
    tr = min(tr, max(r_ceil8, 8))
    tr = max(8, (tr // 8) * 8)

    g = -(-R // tr)                 # number of row chunks == grid size
    r_pad = g * tr
    if r_pad != R:
        # Padded rows produce mu=std=0 and are sliced off below.
        x2d = jnp.pad(x2d, ((0, r_pad - R), (0, 0)))

    inv_d = 1.0 / D
    inv_dm1 = (1.0 / (D - 1)) if D > 1 else float("nan")  # torch.std gives nan for D==1

    kernel = functools.partial(_sr_polling_kernel, inv_d=inv_d, inv_dm1=inv_dm1)

    # TODO(synk): if D is so large that a single (TR, D) block with the full
    # feature dim cannot fit VMEM, add an inner 'arbitrary' grid axis over D
    # chunks with running (sum, sumsq) accumulators in VMEM scratch.
    mu2, std2 = pl.pallas_call(
        kernel,
        out_shape=(
            jax.ShapeDtypeStruct((g, tr), x.dtype),
            jax.ShapeDtypeStruct((g, tr), x.dtype),
        ),
        grid_spec=pltpu.PrefetchScalarGridSpec(
            num_scalar_prefetch=0,
            grid=(g,),
            in_specs=[pl.BlockSpec((tr, D), lambda i: (i, 0))],
            out_specs=[
                pl.BlockSpec((1, tr), lambda i: (i, 0)),
                pl.BlockSpec((1, tr), lambda i: (i, 0)),
            ],
        ),
        compiler_params=pltpu.CompilerParams(
            dimension_semantics=("parallel",),
        ),
    )(x2d)

    mu = mu2.reshape(r_pad)[:R].reshape(tuple(lead))
    std = std2.reshape(r_pad)[:R].reshape(tuple(lead))
    return jnp.concatenate([mu, std], axis=-1)


if __name__ == "__main__":
    key = jax.random.PRNGKey(0)
    B, S, D = 2, 8, 32
    x = jax.random.normal(key, (B, S, D), dtype=jnp.float32)

    out = sr_polling(x)
    out = jax.block_until_ready(out)

    # Pure-JAX reference (torch.std is unbiased by default -> ddof=1).
    mu_ref = jnp.mean(x, axis=-1)
    std_ref = jnp.std(x, axis=-1, ddof=1)
    ref = jnp.concatenate([mu_ref, std_ref], axis=-1)

    assert out.shape == (B, 2 * S), out.shape
    assert jnp.allclose(out, ref, atol=1e-5, rtol=1e-5), (
        float(jnp.max(jnp.abs(out - ref)))
    )
    print("KERNEL_OK")
</pallas_src>

<mosaic_0001>
module attributes {stable_mosaic.version = 11 : i64} {
  func.func @_sr_polling_kernel(%arg0: i32, %arg1: memref<16x32xf32, #tpu.memory_space<vmem>>, %arg2: memref<1x16xf32, #tpu.memory_space<vmem>>, %arg3: memref<1x16xf32, #tpu.memory_space<vmem>>) attributes {dimension_semantics = [#tpu.dimension_semantics<parallel>], iteration_bounds = array<i64: 1>, scalar_prefetch = 0 : i64, scratch_operands = 0 : i64, tpu.core_type = #tpu.core_type<tc>, window_params = [{transform_indices = @transform_0, window_bounds = array<i64: 16, 32>}, {transform_indices = @transform_1, window_bounds = array<i64: 1, 16>}, {transform_indices = @transform_2, window_bounds = array<i64: 1, 16>}]} {
    %c0 = arith.constant 0 : index
    %c0_0 = arith.constant 0 : index
    %0 = vector.load %arg1[%c0, %c0_0] : memref<16x32xf32, #tpu.memory_space<vmem>>, vector<16x32xf32>
    %cst = arith.constant dense<0.000000e+00> : vector<16xf32>
    %1 = vector.multi_reduction <add>, %0, %cst [1] : vector<16x32xf32> to vector<16xf32>
    %2 = arith.mulf %0, %0 : vector<16x32xf32>
    %cst_1 = arith.constant dense<0.000000e+00> : vector<16xf32>
    %3 = vector.multi_reduction <add>, %2, %cst_1 [1] : vector<16x32xf32> to vector<16xf32>
    %cst_2 = arith.constant 3.125000e-02 : f32
    %4 = vector.broadcast %cst_2 : f32 to vector<16xf32>
    %5 = arith.mulf %1, %4 : vector<16xf32>
    %6 = arith.mulf %1, %5 : vector<16xf32>
    %7 = arith.subf %3, %6 : vector<16xf32>
    %cst_3 = arith.constant 0.0322580636 : f32
    %8 = vector.broadcast %cst_3 : f32 to vector<16xf32>
    %9 = arith.mulf %7, %8 : vector<16xf32>
    %cst_4 = arith.constant 0.000000e+00 : f32
    %10 = vector.broadcast %cst_4 : f32 to vector<16xf32>
    %11 = arith.maximumf %9, %10 : vector<16xf32>
    %12 = math.sqrt %11 : vector<16xf32>
    %13 = vector.shape_cast %5 : vector<16xf32> to vector<1x16xf32>
    %c0_5 = arith.constant 0 : index
    %c0_6 = arith.constant 0 : index
    %14 = vector.load %arg2[%c0_5, %c0_6] : memref<1x16xf32, #tpu.memory_space<vmem>>, vector<1x16xf32>
    tpu.vector_store %arg2[%c0_5, %c0_6], %13 {strides = array<i32>} : memref<1x16xf32, #tpu.memory_space<vmem>>, vector<1x16xf32>,
    %15 = vector.shape_cast %12 : vector<16xf32> to vector<1x16xf32>
    %c0_7 = arith.constant 0 : index
    %c0_8 = arith.constant 0 : index
    %16 = vector.load %arg3[%c0_7, %c0_8] : memref<1x16xf32, #tpu.memory_space<vmem>>, vector<1x16xf32>
    tpu.vector_store %arg3[%c0_7, %c0_8], %15 {strides = array<i32>} : memref<1x16xf32, #tpu.memory_space<vmem>>, vector<1x16xf32>,
    return
  }
  func.func @transform_0(%arg0: i32) -> (i32, i32) {
    %c0_i32 = arith.constant 0 : i32
    %c0_i32_0 = arith.constant 0 : i32
    return %arg0, %c0_i32 : i32, i32
  }
  func.func @transform_1(%arg0: i32) -> (i32, i32) {
    %c0_i32 = arith.constant 0 : i32
    %c0_i32_0 = arith.constant 0 : i32
    return %arg0, %c0_i32 : i32, i32
  }
  func.func @transform_2(%arg0: i32) -> (i32, i32) {
    %c0_i32 = arith.constant 0 : i32
    %c0_i32_0 = arith.constant 0 : i32
    return %arg0, %c0_i32 : i32, i32
  }
}

</mosaic_0001>

<llo_original>
// kernel: tpu_custom_call.1
$region0: #{tpu_custom_call.1}
  #allocation0 [shape = 'u32[]', space=smem, size = 0x4, offset = 0x4, fixed_abs, tag = 'smem constant byte address 0x4 - core index']
  #allocation1 [shape = 'u32[72,128]{1,0:T(1,128)}', space=vmem, size = 0x9000, scoped, tag = 'internal scratch']
  %s0 = inlined_call_operand.hbm [shape: f32[16,32], index: 0, kind: input, shape index: {}]
  %s1 = inlined_call_operand.hbm [shape: f32[1,16], index: 1, kind: output, shape index: {0}]
  %s2 = inlined_call_operand.hbm [shape: f32[1,16], index: 2, kind: output, shape index: {1}]
  %3 = xla_tuple %s1, %s2
  %s4 = sld [smem:[#allocation0]]
  $region26: #{tpu_custom_call.1} parent=0
    _
  %s6 = ssub.s32 1, %s4
  %s7 = scalar_select 0, %s6, %s4
  $region1: #{tpu_custom_call.1} parent=0
    #allocation2 [shape = 'u8[8192]{0}', space=vmem, size = 0x2000, scoped, tag = 'input window, operand 0, single buffered']
    #allocation3 [shape = 's32[1]{0}', space=sflag, size = 0x4, scoped, tag = 'scoped memory for tpu_custom_call.1']
    #allocation4 [shape = 's32[1]{0}', space=sflag, size = 0x4, scoped, tag = 'scoped memory for tpu_custom_call.1']
    #allocation5 [shape = 'u8[512]{0}', space=vmem, size = 0x400, scoped, tag = 'output window, operand 0, single buffered']
    #allocation6 [shape = 'u8[512]{0}', space=vmem, size = 0x400, scoped, tag = 'output window, operand 1, single buffered']
    #allocation7 [shape = 's32[1]{0}', space=sflag, size = 0x4, scoped, tag = 'scoped memory for tpu_custom_call.1']
    %8 = vsyncpa [#allocation3], 0
    %9 = vsyncpa [#allocation4], 0
    %10 = vsyncpa [#allocation7], 0
    // Predicated region
    $region2: #{tpu_custom_call.1} parent=1 // pred_check
      _
    $region3: #{tpu_custom_call.1} parent=1 // pred_check_branch
      %12 = sbr.rel (0) target = $region5
    $region4: #{tpu_custom_call.1} parent=1 // pred_region
      %14 = vsyncadd [#allocation3], 0
      %s15 = sshll.u32 %s0, 4
      %s16 = int_to_ptr.hbm [resolvable:$true] %s15
      %s17 = sshll.u32 [#allocation2], 4
      %s18 = int_to_ptr.vmem [resolvable:$true] %s17
      %23 = dma.hbm_to_vmem [thread:$0]  %s16, 256, %s18, [#allocation3], 128, 128, 8
    $region5: #{tpu_custom_call.1} parent=1 // pred_fallthru
      _
    // Predicated region
    $region6: #{tpu_custom_call.1} parent=1 // pred_check
      _
    $region7: #{tpu_custom_call.1} parent=1 // pred_check_branch
      %25 = sbr.rel (0) target = $region9
    $region8: #{tpu_custom_call.1} parent=1 // pred_region
      %27 = dma.done [#allocation3], 256
    $region9: #{tpu_custom_call.1} parent=1 // pred_fallthru
      _
    %v28 = vld [vmem:[#allocation2] sm:$0xff]
    %v29 = vld [vmem:[#allocation2 + $0x8] sm:$0xff]
    %vm30 = vcmask 261120
    %v31 = vsel %vm30, %v28, 0.0
    %32 = vadd.xlane.f32.xlu0 %v31
    %v33 = vpop.xlane.xlu0 %32
    %v34 = vsel %vm30, %v29, 0.0
    %35 = vadd.xlane.f32.xlu0 %v34
    %v36 = vpop.xlane.xlu0 %35
    %v37 = vmul.f32 %v28, %v28
    %v38 = vmul.f32 %v29, %v29
    %v39 = vsel %vm30, %v37, 0.0
    %40 = vadd.xlane.f32.xlu0 %v39
    %v41 = vpop.xlane.xlu0 %40
    %v42 = vsel %vm30, %v38, 0.0
    %43 = vadd.xlane.f32.xlu0 %v42
    %v44 = vpop.xlane.xlu0 %43
    %v45 = vmul.f32 %v33, 0.03125
    %v46 = vmul.f32 %v36, 0.03125
    %v47 = vmul.f32 %v33, %v45
    %v48 = vmul.f32 %v36, %v46
    %v49 = vsub.f32 %v41, %v47
    %v50 = vsub.f32 %v44, %v48
    %v51 = vmul.f32 %v49, 0.032258064
    %v52 = vmul.f32 %v50, 0.032258064
    %v53 = vmax.f32 %v51, 0.0
    %v54 = vmax.f32 %v52, 0.0
    %v55 = vrsqrt.pop %v53
    %v56 = vmul.f32 %v55, %v53
    %v57 = vmul.f32 %v56, %v55
    %v58 = vmul.f32 0.5, %v57
    %v59 = vsub.f32 1.5, %v58
    %v60 = vmul.f32 %v55, %v59
    %v61 = vmul.f32 %v53, %v60
    %vm62 = vcmp.eq.f32.partialorder %v53, inf
    %v63 = vsel %vm62, %v53, %v61
    %vm64 = vcmp.eq.f32.partialorder %v53, 0.0
    %v65 = vand.u32 %v53, 2147483648
    %v66 = vsel %vm64, %v65, %v63
    %v67 = vrsqrt.pop %v54
    %v68 = vmul.f32 %v67, %v54
    %v69 = vmul.f32 %v68, %v67
    %v70 = vmul.f32 0.5, %v69
    %v71 = vsub.f32 1.5, %v70
    %v72 = vmul.f32 %v67, %v71
    %v73 = vmul.f32 %v54, %v72
    %vm74 = vcmp.eq.f32.partialorder %v54, inf
    %v75 = vsel %vm74, %v54, %v73
    %vm76 = vcmp.eq.f32.partialorder %v54, 0.0
    %v77 = vand.u32 %v54, 2147483648
    %v78 = vsel %vm76, %v77, %v75
    %v81 = vlaneseq
    %v82 = vand.u32 %v81, 127
    %v83 = vperm.slane %v45, %v82
    %v84 = vadd.s32 %v82, 4294967288
    %v85 = vperm.slane %v46, %v84
    %vm86 = vcmask 130112
    %v87 = vsel %vm86, %v85, %v83
    %vm89 = vcmask 122880
    %90 = vst.msk [vmem:[#allocation5] sm:$0x1] %vm89, %v87
    %v93 = vperm.slane %v66, %v82
    %v94 = vperm.slane %v78, %v84
    %v95 = vsel %vm86, %v94, %v93
    %97 = vst.msk [vmem:[#allocation6] sm:$0x1] %vm89, %v95
    // Predicated region
    $region10: #{tpu_custom_call.1} parent=1 // pred_check
      _
    $region11: #{tpu_custom_call.1} parent=1 // pred_check_branch
      %99 = sbr.rel (0) target = $region13
    $region12: #{tpu_custom_call.1} parent=1 // pred_region
      %101 = vsyncadd [#allocation4], 0
      %s103 = sshll.u32 [#allocation5], 4
      %s104 = int_to_ptr.vmem [resolvable:$true] %s103
      %s105 = sshll.u32 %s1, 4
      %s106 = int_to_ptr.hbm [resolvable:$true] %s105
      %108 = dma.vmem_to_hbm [thread:$0]  %s104, 16, %s106, [#allocation4]
    $region13: #{tpu_custom_call.1} parent=1 // pred_fallthru
      _
    // Predicated region
    $region14: #{tpu_custom_call.1} parent=1 // pred_check
      _
    $region15: #{tpu_custom_call.1} parent=1 // pred_check_branch
      %110 = sbr.rel (0) target = $region17
    $region16: #{tpu_custom_call.1} parent=1 // pred_region
      %112 = vsyncadd [#allocation7], 0
      %s114 = sshll.u32 [#allocation6], 4
      %s115 = int_to_ptr.vmem [resolvable:$true] %s114
      %s116 = sshll.u32 %s2, 4
      %s117 = int_to_ptr.hbm [resolvable:$true] %s116
      %119 = dma.vmem_to_hbm [thread:$0]  %s115, 16, %s117, [#allocation7]
    $region17: #{tpu_custom_call.1} parent=1 // pred_fallthru
      _
    // Predicated region
    $region18: #{tpu_custom_call.1} parent=1 // pred_check
      _
    $region19: #{tpu_custom_call.1} parent=1 // pred_check_branch
      %121 = sbr.rel (0) target = $region21
    $region20: #{tpu_custom_call.1} parent=1 // pred_region
      %123 = dma.done [#allocation4], 16
    $region21: #{tpu_custom_call.1} parent=1 // pred_fallthru
      _
    // Predicated region
    $region22: #{tpu_custom_call.1} parent=1 // pred_check
      _
    $region23: #{tpu_custom_call.1} parent=1 // pred_check_branch
      %125 = sbr.rel (0) target = $region25
    $region24: #{tpu_custom_call.1} parent=1 // pred_region
      %127 = dma.done [#allocation7], 16
    $region25: #{tpu_custom_call.1} parent=1 // pred_fallthru
      _
    %128 = vsyncpa [#allocation3], 1
    %129 = vsyncpa [#allocation4], 1
    %130 = vsyncpa [#allocation7], 1

</llo_original>
